<compile_context>
chip_gen: v7x
topology: tpu7x:2x2x1
jax: 0.10.0
libtpu: 0.0.40
codegen_flags: <defaults>
</compile_context>

<pallas_src>
import jax
import jax.numpy as jnp
import numpy as np
from jax.experimental import pallas as pl
from jax.experimental.pallas import tpu as pltpu

EPS = 1e-5


# ---------------------------------------------------------------------------
# Host-side (one-time) construction of folded conv / selection operands.
# ---------------------------------------------------------------------------
def _reflect(i, n):
    if i < 0:
        return -i
    if i >= n:
        return 2 * n - 2 - i
    return i


def _fold_conv_weight(w_oihw, width, n_img):
    """(Cout,Cin,3,3) torch weight -> (N*W*Cin, 3*N*W*Cout) stacked GEMM operand.

    For each dy, a (W*Cin, W*Cout) banded matrix folds the 3 dx taps, the
    reflect-x padding and the channel mixing; it is made block-diagonal over
    the images packed on the lane axis, and the 3 dy matrices are stacked
    along the output (N) axis so the conv is a single MXU call.
    """
    cout, cin = int(w_oihw.shape[0]), int(w_oihw.shape[1])
    taps = jnp.transpose(w_oihw, (2, 3, 1, 0)).astype(jnp.float32)  # (dy,dx,ci,co)
    # U[dx, x_src, x] = 1 iff reflect(x + dx - 1) == x_src
    u = np.zeros((3, width, width), np.float32)
    for dx in range(3):
        for x in range(width):
            u[dx, _reflect(x + dx - 1, width), x] = 1.0
    eye_n = np.eye(n_img, dtype=np.float32)
    blocks = []
    for dy in range(3):
        m = jnp.einsum("dpw,dio->piwo", u, taps[dy]).reshape(width * cin,
                                                             width * cout)
        blocks.append(jnp.kron(eye_n, m))      # block-diagonal over packed images
    return jnp.concatenate(blocks, axis=1)      # (N*W*C, 3*N*W*C)


def _row_reflect_select(height):
    """(H, 2H) merged reflect-y selector: [r0 | r2] so r0@z0 + r2@z2 is one dot."""
    r = np.zeros((height, 2 * height), np.float32)
    for y in range(height):
        r[y, _reflect(y - 1, height)] = 1.0            # dy = 0 tap source row
        r[y, height + _reflect(y + 1, height)] = 1.0   # dy = 2 tap source row
    return jnp.asarray(r)


def fold_resnet_block_params(params, n, c, h, w):
    """One-time prep (keep OUT of the per-call jitted path; cache the result)."""
    w1, b1, g1, be1, w2, b2, g2, be2 = params
    del b1, b2  # conv bias before train-mode BN is cancelled exactly by mean sub
    nwc = n * w * c
    rsel = _row_reflect_select(h)                       # (H, 2H)
    w1s = _fold_conv_weight(w1, w, n)                   # (NWC, 3*NWC)
    w2s = _fold_conv_weight(w2, w, n)
    # Channel pool + broadcast over lane layout (lane = n*W*C + x*C + c),
    # with the 1/(N*H*W) normalization folded in.
    ch = np.arange(nwc) % c
    a = jnp.asarray((ch[:, None] == ch[None, :]).astype(np.float32)
                    / float(n * h * w))                 # (NWC, NWC)
    prm = jnp.stack([
        jnp.tile(g1.astype(jnp.float32), n * w),
        jnp.tile(be1.astype(jnp.float32), n * w),
        jnp.tile(g2.astype(jnp.float32), n * w),
        jnp.tile(be2.astype(jnp.float32), n * w),
    ], axis=0)                                          # (4, NWC)
    return rsel, w1s, w2s, a, prm


# ---------------------------------------------------------------------------
# Fused Pallas kernel
# ---------------------------------------------------------------------------
def _resnet_block_kernel(x_ref, rsel_ref, w1_ref, w2_ref, a_ref, prm_ref,
                         out_ref):
    _, nwc = out_ref.shape               # (H, N*W*C) — lane-dense output slab

    x = x_ref[...]                       # (H, NWC)
    rsel = rsel_ref[...]                 # (H, 2H) merged reflect-y selector
    a = a_ref[...]                       # (NWC, NWC) channel pool+broadcast

    def conv3x3(src, w_ref):
        # Single fused MXU call: (H,NWC) @ (NWC, 3*NWC); dy taps stacked on N.
        z = jnp.dot(src, w_ref[...], preferred_element_type=jnp.float32)
        z1 = z[:, nwc:2 * nwc]
        # Merged reflect-y row selection for dy=0 and dy=2 in ONE small dot.
        zcat = jnp.concatenate([z[:, :nwc], z[:, 2 * nwc:]], axis=0)  # (2H, NWC)
        return jnp.dot(rsel, zcat, preferred_element_type=jnp.float32) + z1

    def batch_norm(acc, gamma_row, beta_row):
        # Train-mode BN, mean-centered (two-pass) biased variance.
        mean_row = jnp.dot(jnp.sum(acc, axis=0, keepdims=True), a,
                           preferred_element_type=jnp.float32)        # (1, NWC)
        cen = acc - mean_row
        var_row = jnp.dot(jnp.sum(cen * cen, axis=0, keepdims=True), a,
                          preferred_element_type=jnp.float32)         # (1, NWC)
        scale = jax.lax.rsqrt(var_row + EPS) * gamma_row
        return cen * scale + beta_row

    g1 = prm_ref[0:1, :]
    b1 = prm_ref[1:2, :]
    g2 = prm_ref[2:3, :]
    b2 = prm_ref[3:4, :]

    # conv1 + BN1 + ReLU   (conv bias omitted: cancelled by BN mean subtraction)
    hid = jnp.maximum(batch_norm(conv3x3(x, w1_ref), g1, b1), 0.0)
    # conv2 + BN2 + residual  (hid never leaves VMEM/vregs)
    out_ref[...] = x + batch_norm(conv3x3(hid, w2_ref), g2, b2)


# ---------------------------------------------------------------------------
# Wrapper
# ---------------------------------------------------------------------------
@jax.jit
def resnet_block_forward(x_nchw, folded):
    """Pallas ResnetBlock.forward (reflect pad, no dropout); NCHW in/out."""
    rsel, w1s, w2s, a, prm = folded
    n, c, h, w = x_nchw.shape
    nwc = n * w * c

    # NCHW -> lane-dense (H, N*W*C): both images packed on the 128-wide lane
    # axis.  TODO(synk): at production sizes keep NHWC end-to-end (or fold the
    # layout change into the kernel) to avoid these extra HBM round trips.
    x_rows = jnp.transpose(x_nchw.astype(jnp.float32), (2, 0, 3, 1)).reshape(h, nwc)

    vmem = pl.BlockSpec(memory_space=pltpu.MemorySpace.VMEM)
    # Whole working set (<0.5 MiB) fits VMEM -> single shot, no grid.
    # TODO(synk): at production H*W add a row-tiled grid (conv + cross-tile
    # stat accumulation, then normalize/apply), budgeted for v7x's 64 MiB VMEM
    # and with the row axis marked "parallel" for its two TensorCores.
    out_rows = pl.pallas_call(
        _resnet_block_kernel,
        out_shape=jax.ShapeDtypeStruct((h, nwc), jnp.float32),
        in_specs=[vmem] * 6,
        out_specs=vmem,
    )(x_rows, rsel, w1s, w2s, a, prm)

    return jnp.transpose(out_rows.reshape(h, n, w, c), (1, 3, 0, 2))


# ---------------------------------------------------------------------------
# Pure-JAX reference (mirrors the PyTorch module, bias included)
# ---------------------------------------------------------------------------
def resnet_block_reference(x_nchw, params):
    (w1, b1, g1, be1, w2, b2, g2, be2) = params
    x = jnp.transpose(x_nchw, (0, 2, 3, 1)).astype(jnp.float32)

    def conv(inp, wgt, bias):
        xp = jnp.pad(inp, ((0, 0), (1, 1), (1, 1), (0, 0)), mode="reflect")
        w_hwio = jnp.transpose(wgt, (2, 3, 1, 0))
        y = jax.lax.conv_general_dilated(
            xp, w_hwio, (1, 1), "VALID",
            dimension_numbers=("NHWC", "HWIO", "NHWC"))
        return y + bias

    def bn(inp, gamma, beta):
        mean = jnp.mean(inp, axis=(0, 1, 2), keepdims=True)
        var = jnp.mean((inp - mean) ** 2, axis=(0, 1, 2), keepdims=True)
        return (inp - mean) * jax.lax.rsqrt(var + EPS) * gamma + beta

    hh = jnp.maximum(bn(conv(x, w1, b1), g1, be1), 0.0)
    hh = bn(conv(hh, w2, b2), g2, be2)
    return jnp.transpose(x + hh, (0, 3, 1, 2))


# ---------------------------------------------------------------------------
if __name__ == "__main__":
    # ResnetBlock(dim=4, padding_type='reflect', use_dropout=False, use_bias=True)
    N, C, H, W = 2, 4, 16, 16

    key = jax.random.PRNGKey(0)
    ks = jax.random.split(key, 9)
    x = jax.random.normal(ks[0], (N, C, H, W), jnp.float32)

    w1 = jax.random.normal(ks[1], (C, C, 3, 3), jnp.float32) * 0.1
    b1 = jax.random.normal(ks[2], (C,), jnp.float32) * 0.1
    g1 = 1.0 + 0.1 * jax.random.normal(ks[3], (C,), jnp.float32)
    be1 = 0.1 * jax.random.normal(ks[4], (C,), jnp.float32)
    w2 = jax.random.normal(ks[5], (C, C, 3, 3), jnp.float32) * 0.1
    b2 = jax.random.normal(ks[6], (C,), jnp.float32) * 0.1
    g2 = 1.0 + 0.1 * jax.random.normal(ks[7], (C,), jnp.float32)
    be2 = 0.1 * jax.random.normal(ks[8], (C,), jnp.float32)
    params = (w1, b1, g1, be1, w2, b2, g2, be2)

    # One-time prep (hoisted out of the per-call jitted path).
    folded = fold_resnet_block_params(params, N, C, H, W)

    out = jax.block_until_ready(resnet_block_forward(x, folded))
    ref = jax.block_until_ready(resnet_block_reference(x, params))

    assert out.shape == (N, C, H, W)
    assert jnp.allclose(out, ref, rtol=1e-4, atol=1e-4), (
        float(jnp.max(jnp.abs(out - ref))))

    print("KERNEL_OK")
</pallas_src>

<mosaic_0001>
module attributes {stable_mosaic.version = 11 : i64} {
  func.func @_resnet_block_kernel(%arg0: memref<16x128xf32, #tpu.memory_space<vmem>>, %arg1: memref<16x32xf32, #tpu.memory_space<vmem>>, %arg2: memref<128x384xf32, #tpu.memory_space<vmem>>, %arg3: memref<128x384xf32, #tpu.memory_space<vmem>>, %arg4: memref<128x128xf32, #tpu.memory_space<vmem>>, %arg5: memref<4x128xf32, #tpu.memory_space<vmem>>, %arg6: memref<16x128xf32, #tpu.memory_space<vmem>>) attributes {dimension_semantics = [], scalar_prefetch = 0 : i64, scratch_operands = 0 : i64, tpu.core_type = #tpu.core_type<tc>} {
    %c0 = arith.constant 0 : index
    %c0_0 = arith.constant 0 : index
    %0 = vector.load %arg0[%c0, %c0_0] : memref<16x128xf32, #tpu.memory_space<vmem>>, vector<16x128xf32>
    %c0_1 = arith.constant 0 : index
    %c0_2 = arith.constant 0 : index
    %1 = vector.load %arg1[%c0_1, %c0_2] : memref<16x32xf32, #tpu.memory_space<vmem>>, vector<16x32xf32>
    %c0_3 = arith.constant 0 : index
    %c0_4 = arith.constant 0 : index
    %2 = vector.load %arg4[%c0_3, %c0_4] : memref<128x128xf32, #tpu.memory_space<vmem>>, vector<128x128xf32>
    %c0_5 = arith.constant 0 : index
    %c0_6 = arith.constant 0 : index
    %3 = vector.load %arg5[%c0_5, %c0_6] : memref<4x128xf32, #tpu.memory_space<vmem>>, vector<1x128xf32>
    %c1 = arith.constant 1 : index
    %c0_7 = arith.constant 0 : index
    %4 = vector.load %arg5[%c1, %c0_7] : memref<4x128xf32, #tpu.memory_space<vmem>>, vector<1x128xf32>
    %c2 = arith.constant 2 : index
    %c0_8 = arith.constant 0 : index
    %5 = vector.load %arg5[%c2, %c0_8] : memref<4x128xf32, #tpu.memory_space<vmem>>, vector<1x128xf32>
    %c3 = arith.constant 3 : index
    %c0_9 = arith.constant 0 : index
    %6 = vector.load %arg5[%c3, %c0_9] : memref<4x128xf32, #tpu.memory_space<vmem>>, vector<1x128xf32>
    %c0_10 = arith.constant 0 : index
    %c0_11 = arith.constant 0 : index
    %7 = vector.load %arg2[%c0_10, %c0_11] : memref<128x384xf32, #tpu.memory_space<vmem>>, vector<128x384xf32>
    %cst = arith.constant dense<0.000000e+00> : vector<16x384xf32>
    %8 = tpu.matmul %0, %7, %cst {dimension_numbers = #tpu.dot_dimension_numbers<[1], [0], [0], [1], [0, 0, 1, 1], [], []>} : vector<16x128xf32>, vector<128x384xf32>, vector<16x384xf32> -> vector<16x384xf32>
    %9 = vector.extract_strided_slice %8 {offsets = [0, 128], sizes = [16, 128], strides = [1, 1]} : vector<16x384xf32> to vector<16x128xf32>
    %10 = vector.extract_strided_slice %8 {offsets = [0, 0], sizes = [16, 128], strides = [1, 1]} : vector<16x384xf32> to vector<16x128xf32>
    %11 = vector.extract_strided_slice %8 {offsets = [0, 256], sizes = [16, 128], strides = [1, 1]} : vector<16x384xf32> to vector<16x128xf32>
    %12 = tpu.concatenate %10, %11 in 0 : vector<16x128xf32>, vector<16x128xf32> -> vector<32x128xf32>
    %cst_12 = arith.constant dense<0.000000e+00> : vector<16x128xf32>
    %13 = tpu.matmul %1, %12, %cst_12 {dimension_numbers = #tpu.dot_dimension_numbers<[1], [0], [0], [1], [0, 0, 1, 1], [], []>} : vector<16x32xf32>, vector<32x128xf32>, vector<16x128xf32> -> vector<16x128xf32>
    %14 = arith.addf %13, %9 : vector<16x128xf32>
    %cst_13 = arith.constant dense<0.000000e+00> : vector<128xf32>
    %15 = vector.multi_reduction <add>, %14, %cst_13 [0] : vector<16x128xf32> to vector<128xf32>
    %16 = vector.shape_cast %15 : vector<128xf32> to vector<1x128xf32>
    %cst_14 = arith.constant dense<0.000000e+00> : vector<1x128xf32>
    %17 = tpu.matmul %16, %2, %cst_14 {dimension_numbers = #tpu.dot_dimension_numbers<[1], [0], [0], [1], [0, 0, 1, 1], [], []>} : vector<1x128xf32>, vector<128x128xf32>, vector<1x128xf32> -> vector<1x128xf32>
    %18 = vector.broadcast %17 : vector<1x128xf32> to vector<16x128xf32>
    %19 = arith.subf %14, %18 : vector<16x128xf32>
    %20 = arith.mulf %19, %19 : vector<16x128xf32>
    %cst_15 = arith.constant dense<0.000000e+00> : vector<128xf32>
    %21 = vector.multi_reduction <add>, %20, %cst_15 [0] : vector<16x128xf32> to vector<128xf32>
    %22 = vector.shape_cast %21 : vector<128xf32> to vector<1x128xf32>
    %cst_16 = arith.constant dense<0.000000e+00> : vector<1x128xf32>
    %23 = tpu.matmul %22, %2, %cst_16 {dimension_numbers = #tpu.dot_dimension_numbers<[1], [0], [0], [1], [0, 0, 1, 1], [], []>} : vector<1x128xf32>, vector<128x128xf32>, vector<1x128xf32> -> vector<1x128xf32>
    %cst_17 = arith.constant 9.99999974E-6 : f32
    %24 = vector.broadcast %cst_17 : f32 to vector<1x128xf32>
    %25 = arith.addf %23, %24 : vector<1x128xf32>
    %26 = math.rsqrt %25 : vector<1x128xf32>
    %27 = arith.mulf %26, %3 : vector<1x128xf32>
    %28 = vector.broadcast %27 : vector<1x128xf32> to vector<16x128xf32>
    %29 = arith.mulf %19, %28 : vector<16x128xf32>
    %30 = vector.broadcast %4 : vector<1x128xf32> to vector<16x128xf32>
    %31 = arith.addf %29, %30 : vector<16x128xf32>
    %cst_18 = arith.constant 0.000000e+00 : f32
    %32 = vector.broadcast %cst_18 : f32 to vector<16x128xf32>
    %33 = arith.maximumf %31, %32 : vector<16x128xf32>
    %c0_19 = arith.constant 0 : index
    %c0_20 = arith.constant 0 : index
    %34 = vector.load %arg3[%c0_19, %c0_20] : memref<128x384xf32, #tpu.memory_space<vmem>>, vector<128x384xf32>
    %cst_21 = arith.constant dense<0.000000e+00> : vector<16x384xf32>
    %35 = tpu.matmul %33, %34, %cst_21 {dimension_numbers = #tpu.dot_dimension_numbers<[1], [0], [0], [1], [0, 0, 1, 1], [], []>} : vector<16x128xf32>, vector<128x384xf32>, vector<16x384xf32> -> vector<16x384xf32>
    %36 = vector.extract_strided_slice %35 {offsets = [0, 128], sizes = [16, 128], strides = [1, 1]} : vector<16x384xf32> to vector<16x128xf32>
    %37 = vector.extract_strided_slice %35 {offsets = [0, 0], sizes = [16, 128], strides = [1, 1]} : vector<16x384xf32> to vector<16x128xf32>
    %38 = vector.extract_strided_slice %35 {offsets = [0, 256], sizes = [16, 128], strides = [1, 1]} : vector<16x384xf32> to vector<16x128xf32>
    %39 = tpu.concatenate %37, %38 in 0 : vector<16x128xf32>, vector<16x128xf32> -> vector<32x128xf32>
    %cst_22 = arith.constant dense<0.000000e+00> : vector<16x128xf32>
    %40 = tpu.matmul %1, %39, %cst_22 {dimension_numbers = #tpu.dot_dimension_numbers<[1], [0], [0], [1], [0, 0, 1, 1], [], []>} : vector<16x32xf32>, vector<32x128xf32>, vector<16x128xf32> -> vector<16x128xf32>
    %41 = arith.addf %40, %36 : vector<16x128xf32>
    %cst_23 = arith.constant dense<0.000000e+00> : vector<128xf32>
    %42 = vector.multi_reduction <add>, %41, %cst_23 [0] : vector<16x128xf32> to vector<128xf32>
    %43 = vector.shape_cast %42 : vector<128xf32> to vector<1x128xf32>
    %cst_24 = arith.constant dense<0.000000e+00> : vector<1x128xf32>
    %44 = tpu.matmul %43, %2, %cst_24 {dimension_numbers = #tpu.dot_dimension_numbers<[1], [0], [0], [1], [0, 0, 1, 1], [], []>} : vector<1x128xf32>, vector<128x128xf32>, vector<1x128xf32> -> vector<1x128xf32>
    %45 = vector.broadcast %44 : vector<1x128xf32> to vector<16x128xf32>
    %46 = arith.subf %41, %45 : vector<16x128xf32>
    %47 = arith.mulf %46, %46 : vector<16x128xf32>
    %cst_25 = arith.constant dense<0.000000e+00> : vector<128xf32>
    %48 = vector.multi_reduction <add>, %47, %cst_25 [0] : vector<16x128xf32> to vector<128xf32>
    %49 = vector.shape_cast %48 : vector<128xf32> to vector<1x128xf32>
    %cst_26 = arith.constant dense<0.000000e+00> : vector<1x128xf32>
    %50 = tpu.matmul %49, %2, %cst_26 {dimension_numbers = #tpu.dot_dimension_numbers<[1], [0], [0], [1], [0, 0, 1, 1], [], []>} : vector<1x128xf32>, vector<128x128xf32>, vector<1x128xf32> -> vector<1x128xf32>
    %cst_27 = arith.constant 9.99999974E-6 : f32
    %51 = vector.broadcast %cst_27 : f32 to vector<1x128xf32>
    %52 = arith.addf %50, %51 : vector<1x128xf32>
    %53 = math.rsqrt %52 : vector<1x128xf32>
    %54 = arith.mulf %53, %5 : vector<1x128xf32>
    %55 = vector.broadcast %54 : vector<1x128xf32> to vector<16x128xf32>
    %56 = arith.mulf %46, %55 : vector<16x128xf32>
    %57 = vector.broadcast %6 : vector<1x128xf32> to vector<16x128xf32>
    %58 = arith.addf %56, %57 : vector<16x128xf32>
    %59 = arith.addf %0, %58 : vector<16x128xf32>
    %c0_28 = arith.constant 0 : index
    %c0_29 = arith.constant 0 : index
    %60 = vector.load %arg6[%c0_28, %c0_29] : memref<16x128xf32, #tpu.memory_space<vmem>>, vector<16x128xf32>
    tpu.vector_store %arg6[%c0_28, %c0_29], %59 {strides = array<i32>} : memref<16x128xf32, #tpu.memory_space<vmem>>, vector<16x128xf32>,
    return
  }
}

</mosaic_0001>

<llo_original>
// kernel: resnet_block_forward.1
$region0: #{resnet_block_forward.1}
  #allocation0 [shape = 'u32[]', space=smem, size = 0x4, offset = 0x4, fixed_abs, tag = 'smem constant byte address 0x4 - core index']
  #allocation1 [shape = 'u32[144,128]{1,0:T(1,128)}', space=vmem, size = 0x12000, scoped, tag = 'internal scratch']
  %s0 = inlined_call_operand.vmem [shape: f32[16,128], index: 0, kind: input, shape index: {}]
  %s1 = inlined_call_operand.vmem [shape: f32[16,32], index: 1, kind: input, shape index: {}]
  %s2 = inlined_call_operand.vmem [shape: f32[128,384], index: 2, kind: input, shape index: {}]
  %s3 = inlined_call_operand.hbm [shape: f32[128,384], index: 3, kind: input, shape index: {}]
  %s4 = inlined_call_operand.hbm [shape: f32[128,128], index: 4, kind: input, shape index: {}]
  %s5 = inlined_call_operand.vmem [shape: f32[4,128], index: 5, kind: input, shape index: {}]
  %s6 = inlined_call_operand.vmem [shape: f32[16,128], index: 6, kind: output, shape index: {}]
  %s7 = sld [smem:[#allocation0]]
  $region42: #{resnet_block_forward.1} parent=0
    _
  %s9 = ssub.s32 1, %s7
  %s10 = scalar_select 0, %s9, %s7
  $region1: #{resnet_block_forward.1} parent=0
    #allocation2 [shape = 'u8[196608]{0}', space=vmem, size = 0x30000, scoped, tag = 'input window, operand 3, single buffered']
    #allocation3 [shape = 's32[1]{0}', space=sflag, size = 0x4, scoped, tag = 'scoped memory for resnet_block_forward.1']
    #allocation4 [shape = 'u8[65536]{0}', space=vmem, size = 0x10000, scoped, tag = 'input window, operand 4, single buffered']
    #allocation5 [shape = 's32[1]{0}', space=sflag, size = 0x4, scoped, tag = 'scoped memory for resnet_block_forward.1']
    %11 = vsyncpa [#allocation3], 0
    %12 = vsyncpa [#allocation5], 0
    // Predicated region
    $region2: #{resnet_block_forward.1} parent=1 // pred_check
      _
    $region3: #{resnet_block_forward.1} parent=1 // pred_check_branch
      %14 = sbr.rel (0) target = $region5
    $region4: #{resnet_block_forward.1} parent=1 // pred_region
      _
    $region5: #{resnet_block_forward.1} parent=1 // pred_fallthru
      _
    // Predicated region
    $region6: #{resnet_block_forward.1} parent=1 // pred_check
      _
    $region7: #{resnet_block_forward.1} parent=1 // pred_check_branch
      %16 = sbr.rel (0) target = $region9
    $region8: #{resnet_block_forward.1} parent=1 // pred_region
      _
    $region9: #{resnet_block_forward.1} parent=1 // pred_fallthru
      _
    // Predicated region
    $region10: #{resnet_block_forward.1} parent=1 // pred_check
      _
    $region11: #{resnet_block_forward.1} parent=1 // pred_check_branch
      %18 = sbr.rel (0) target = $region13
    $region12: #{resnet_block_forward.1} parent=1 // pred_region
      _
    $region13: #{resnet_block_forward.1} parent=1 // pred_fallthru
      _
    // Predicated region
    $region14: #{resnet_block_forward.1} parent=1 // pred_check
      _
    $region15: #{resnet_block_forward.1} parent=1 // pred_check_branch
      %20 = sbr.rel (0) target = $region17
    $region16: #{resnet_block_forward.1} parent=1 // pred_region
      %s22 = ssub.s32 6144, 6144
      %23 = vsyncadd [#allocation3], %s22
      %s24 = sshll.u32 [#allocation2], 4
      %s25 = int_to_ptr.vmem [resolvable:$true] %s24
      %30 = dma.hbm_to_vmem [thread:$0]  %s3, 6144, %s25, [#allocation3], 384, 384, 24
    $region17: #{resnet_block_forward.1} parent=1 // pred_fallthru
      _
    // Predicated region
    $region18: #{resnet_block_forward.1} parent=1 // pred_check
      _
    $region19: #{resnet_block_forward.1} parent=1 // pred_check_branch
      %32 = sbr.rel (0) target = $region21
    $region20: #{resnet_block_forward.1} parent=1 // pred_region
      %s34 = ssub.s32 2048, 2048
      %35 = vsyncadd [#allocation5], %s34
      %s36 = sshll.u32 [#allocation4], 4
      %s37 = int_to_ptr.vmem [resolvable:$true] %s36
      %42 = dma.hbm_to_vmem [thread:$0]  %s4, 2048, %s37, [#allocation5], 128, 128, 8
    $region21: #{resnet_block_forward.1} parent=1 // pred_fallthru
      _
    // Predicated region
    $region22: #{resnet_block_forward.1} parent=1 // pred_check
      _
    $region23: #{resnet_block_forward.1} parent=1 // pred_check_branch
      %44 = sbr.rel (0) target = $region25
    $region24: #{resnet_block_forward.1} parent=1 // pred_region
      _
    $region25: #{resnet_block_forward.1} parent=1 // pred_fallthru
      _
    // Predicated region
    $region26: #{resnet_block_forward.1} parent=1 // pred_check
      _
    $region27: #{resnet_block_forward.1} parent=1 // pred_check_branch
      %46 = sbr.rel (0) target = $region29
    $region28: #{resnet_block_forward.1} parent=1 // pred_region
      %47 = dma.done [#allocation3], 6144
    $region29: #{resnet_block_forward.1} parent=1 // pred_fallthru
      _
    // Predicated region
    $region30: #{resnet_block_forward.1} parent=1 // pred_check
      _
    $region31: #{resnet_block_forward.1} parent=1 // pred_check_branch
      %49 = sbr.rel (0) target = $region33
    $region32: #{resnet_block_forward.1} parent=1 // pred_region
      %50 = dma.done [#allocation5], 2048
    $region33: #{resnet_block_forward.1} parent=1 // pred_fallthru
      _
    %v51 = vld [vmem:[%s0] sm:$0xff]
    %v52 = vld [vmem:[%s0 + $0x8] sm:$0xff]
    %v53 = vld [vmem:[%s1] sm:$0xff]
    %v54 = vld [vmem:[%s1 + $0x8] sm:$0xff]
    %v55 = vld [vmem:[#allocation4] sm:$0xff]
    %v56 = vld [vmem:[#allocation4 + $0x8] sm:$0xff]
    %v57 = vld [vmem:[#allocation4 + $0x10] sm:$0xff]
    %v58 = vld [vmem:[#allocation4 + $0x18] sm:$0xff]
    %v59 = vld [vmem:[#allocation4 + $0x20] sm:$0xff]
    %v60 = vld [vmem:[#allocation4 + $0x28] sm:$0xff]
    %v61 = vld [vmem:[#allocation4 + $0x30] sm:$0xff]
    %v62 = vld [vmem:[#allocation4 + $0x38] sm:$0xff]
    %v63 = vld [vmem:[#allocation4 + $0x40] sm:$0xff]
    %v64 = vld [vmem:[#allocation4 + $0x48] sm:$0xff]
    %v65 = vld [vmem:[#allocation4 + $0x50] sm:$0xff]
    %v66 = vld [vmem:[#allocation4 + $0x58] sm:$0xff]
    %v67 = vld [vmem:[#allocation4 + $0x60] sm:$0xff]
    %v68 = vld [vmem:[#allocation4 + $0x68] sm:$0xff]
    %v69 = vld [vmem:[#allocation4 + $0x70] sm:$0xff]
    %v70 = vld [vmem:[#allocation4 + $0x78] sm:$0xff]
    %v71 = vld [vmem:[%s5] sm:$0x1]
    %v72 = vld [vmem:[%s5 + $0x1] sm:$0x1]
    %v73 = vld [vmem:[%s5 + $0x2] sm:$0x1]
    %v74 = vld [vmem:[%s5 + $0x3] sm:$0x1]
    %v75 = vld [vmem:[%s2] sm:$0xff]
    %v76 = vld [vmem:[%s2 + $0x8] sm:$0xff]
    %v77 = vld [vmem:[%s2 + $0x10] sm:$0xff]
    %v78 = vld [vmem:[%s2 + $0x18] sm:$0xff]
    %v79 = vld [vmem:[%s2 + $0x20] sm:$0xff]
    %v80 = vld [vmem:[%s2 + $0x28] sm:$0xff]
    %v81 = vld [vmem:[%s2 + $0x30] sm:$0xff]
    %v82 = vld [vmem:[%s2 + $0x38] sm:$0xff]
    %v83 = vld [vmem:[%s2 + $0x40] sm:$0xff]
    %v84 = vld [vmem:[%s2 + $0x48] sm:$0xff]
    %v85 = vld [vmem:[%s2 + $0x50] sm:$0xff]
    %v86 = vld [vmem:[%s2 + $0x58] sm:$0xff]
    %v87 = vld [vmem:[%s2 + $0x60] sm:$0xff]
    %v88 = vld [vmem:[%s2 + $0x68] sm:$0xff]
    %v89 = vld [vmem:[%s2 + $0x70] sm:$0xff]
    %v90 = vld [vmem:[%s2 + $0x78] sm:$0xff]
    %v91 = vld [vmem:[%s2 + $0x80] sm:$0xff]
    %v92 = vld [vmem:[%s2 + $0x88] sm:$0xff]
    %v93 = vld [vmem:[%s2 + $0x90] sm:$0xff]
    %v94 = vld [vmem:[%s2 + $0x98] sm:$0xff]
    %v95 = vld [vmem:[%s2 + $0xa0] sm:$0xff]
    %v96 = vld [vmem:[%s2 + $0xa8] sm:$0xff]
    %v97 = vld [vmem:[%s2 + $0xb0] sm:$0xff]
    %v98 = vld [vmem:[%s2 + $0xb8] sm:$0xff]
    %v99 = vld [vmem:[%s2 + $0xc0] sm:$0xff]
    %v100 = vld [vmem:[%s2 + $0xc8] sm:$0xff]
    %v101 = vld [vmem:[%s2 + $0xd0] sm:$0xff]
    %v102 = vld [vmem:[%s2 + $0xd8] sm:$0xff]
    %v103 = vld [vmem:[%s2 + $0xe0] sm:$0xff]
    %v104 = vld [vmem:[%s2 + $0xe8] sm:$0xff]
    %v105 = vld [vmem:[%s2 + $0xf0] sm:$0xff]
    %v106 = vld [vmem:[%s2 + $0xf8] sm:$0xff]
    %v107 = vld [vmem:[%s2 + $0x100] sm:$0xff]
    %v108 = vld [vmem:[%s2 + $0x108] sm:$0xff]
    %v109 = vld [vmem:[%s2 + $0x110] sm:$0xff]
    %v110 = vld [vmem:[%s2 + $0x118] sm:$0xff]
    %v111 = vld [vmem:[%s2 + $0x120] sm:$0xff]
    %v112 = vld [vmem:[%s2 + $0x128] sm:$0xff]
    %v113 = vld [vmem:[%s2 + $0x130] sm:$0xff]
    %v114 = vld [vmem:[%s2 + $0x138] sm:$0xff]
    %v115 = vld [vmem:[%s2 + $0x140] sm:$0xff]
    %v116 = vld [vmem:[%s2 + $0x148] sm:$0xff]
    %v117 = vld [vmem:[%s2 + $0x150] sm:$0xff]
    %v118 = vld [vmem:[%s2 + $0x158] sm:$0xff]
    %v119 = vld [vmem:[%s2 + $0x160] sm:$0xff]
    %v120 = vld [vmem:[%s2 + $0x168] sm:$0xff]
    %v121 = vld [vmem:[%s2 + $0x170] sm:$0xff]
    %v122 = vld [vmem:[%s2 + $0x178] sm:$0xff]
    %123 = vmatprep.subr.mxu0 %v76
    %124 = vmatpush1.msra.mxu0 %v75
    %125 = vmatprep.subr.mxu0 %v79
    %126 = vmatpush1.msra.mxu0 %v78
    %127 = vmatprep.subr.mxu0 %v82
    %128 = vmatpush1.msra.mxu0 %v81
    %129 = vmatprep.subr.mxu0 %v85
    %130 = vmatpush1.msra.mxu0 %v84
    %131 = vmatprep.subr.mxu0 %v88
    %132 = vmatpush1.msra.mxu0 %v87
    %133 = vmatprep.subr.mxu0 %v91
    %134 = vmatpush1.msra.mxu0 %v90
    %135 = vmatprep.subr.mxu0 %v94
    %136 = vmatpush1.msra.mxu0 %v93
    %137 = vmatprep.subr.mxu0 %v97
    %138 = vmatpush1.msra.mxu0 %v96
    %139 = vmatprep.subr.mxu0 %v100
    %140 = vmatpush1.msra.mxu0 %v99
    %141 = vmatprep.subr.mxu0 %v103
    %142 = vmatpush1.msra.mxu0 %v102
    %143 = vmatprep.subr.mxu0 %v106
    %144 = vmatpush1.msra.mxu0 %v105
    %145 = vmatprep.subr.mxu0 %v109
    %146 = vmatpush1.msra.mxu0 %v108
    %147 = vmatprep.subr.mxu0 %v112
    %148 = vmatpush1.msra.mxu0 %v111
    %149 = vmatprep.subr.mxu0 %v115
    %150 = vmatpush1.msra.mxu0 %v114
    %151 = vmatprep.subr.mxu0 %v118
    %152 = vmatpush1.msra.mxu0 %v117
    %153 = vmatprep.subr.mxu0 %v121
    %154 = vmatpush1.msra.mxu0 %v120
    %155 = vmatprep.subr.mxu0 0.0
    %156 = vmatpush1.msra.mxu0 0.0
    %157 = vmatprep.subr.mxu0 0.0
    %158 = vmatpush1.msra.mxu0 0.0
    %159 = vmatprep.subr.mxu0 0.0
    %160 = vmatpush1.msra.mxu0 0.0
    %161 = vmatprep.subr.mxu0 0.0
    %162 = vmatpush1.msra.mxu0 0.0
    %163 = vmatprep.subr.mxu0 0.0
    %164 = vmatpush1.msra.mxu0 0.0
    %165 = vmatprep.subr.mxu0 0.0
    %166 = vmatpush1.msra.mxu0 0.0
    %167 = vmatprep.subr.mxu0 0.0
    %168 = vmatpush1.msra.mxu0 0.0
    %169 = vmatprep.subr.mxu0 0.0
    %170 = vmatpush1.msra.mxu0 0.0
    %171 = vmatprep.subr.mxu0 0.0
    %172 = vmatpush1.msra.mxu0 0.0
    %173 = vmatprep.subr.mxu0 0.0
    %174 = vmatpush1.msra.mxu0 0.0
    %175 = vmatprep.subr.mxu0 0.0
    %176 = vmatpush1.msra.mxu0 0.0
    %177 = vmatprep.subr.mxu0 0.0
    %178 = vmatpush1.msra.mxu0 0.0
    %179 = vmatprep.subr.mxu0 0.0
    %180 = vmatpush1.msra.mxu0 0.0
    %181 = vmatprep.subr.mxu0 0.0
    %182 = vmatpush1.msra.mxu0 0.0
    %183 = vmatprep.subr.mxu0 0.0
    %184 = vmatpush1.msra.mxu0 0.0
    %185 = vmatprep.subr.mxu0 0.0
    %186 = vmatpush1.msra.mxu0 0.0
    %187 = vmatprep.mubr.f32.mxu0 0.0
    %188 = vmatmul.mubr.f32.gmra.mrb[0].mxu0 %v51
    %v189 = vpop.f32.mrb[0].mxu0
    %v190 = vadd.f32 0.0, %v189
    %v191 = vpop.f32.mrb[0].mxu0
    %v192 = vadd.f32 0.0, %v191
    %193 = vmatprep.mubr.f32.mxu0 0.0
    %194 = vmatmul.mubr.f32.gmra.mrb[0].mxu0 %v52
    %v195 = vpop.f32.mrb[0].mxu0
    %v196 = vadd.f32 0.0, %v195
    %v197 = vpop.f32.mrb[0].mxu0
    %v198 = vadd.f32 0.0, %v197
    %199 = vdwg.mxu0
    %200 = vmatprep.subr.mxu0 0.0
    %201 = vmatpush1.msra.mxu0 %v77
    %202 = vmatprep.subr.mxu0 0.0
    %203 = vmatpush1.msra.mxu0 %v80
    %204 = vmatprep.subr.mxu0 0.0
    %205 = vmatpush1.msra.mxu0 %v83
    %206 = vmatprep.subr.mxu0 0.0
    %207 = vmatpush1.msra.mxu0 %v86
    %208 = vmatprep.subr.mxu0 0.0
    %209 = vmatpush1.msra.mxu0 %v89
    %210 = vmatprep.subr.mxu0 0.0
    %211 = vmatpush1.msra.mxu0 %v92
    %212 = vmatprep.subr.mxu0 0.0
    %213 = vmatpush1.msra.mxu0 %v95
    %214 = vmatprep.subr.mxu0 0.0
    %215 = vmatpush1.msra.mxu0 %v98
    %216 = vmatprep.subr.mxu0 0.0
    %217 = vmatpush1.msra.mxu0 %v101
    %218 = vmatprep.subr.mxu0 0.0
    %219 = vmatpush1.msra.mxu0 %v104
    %220 = vmatprep.subr.mxu0 0.0
    %221 = vmatpush1.msra.mxu0 %v107
    %222 = vmatprep.subr.mxu0 0.0
    %223 = vmatpush1.msra.mxu0 %v110
    %224 = vmatprep.subr.mxu0 0.0
    %225 = vmatpush1.msra.mxu0 %v113
    %226 = vmatprep.subr.mxu0 0.0
    %227 = vmatpush1.msra.mxu0 %v116
    %228 = vmatprep.subr.mxu0 0.0
    %229 = vmatpush1.msra.mxu0 %v119
    %230 = vmatprep.subr.mxu0 0.0
    %231 = vmatpush1.msra.mxu0 %v122
    %232 = vmatprep.subr.mxu0 0.0
    %233 = vmatpush1.msra.mxu0 0.0
    %234 = vmatprep.subr.mxu0 0.0
    %235 = vmatpush1.msra.mxu0 0.0
    %236 = vmatprep.subr.mxu0 0.0
    %237 = vmatpush1.msra.mxu0 0.0
    %238 = vmatprep.subr.mxu0 0.0
    %239 = vmatpush1.msra.mxu0 0.0
    %240 = vmatprep.subr.mxu0 0.0
    %241 = vmatpush1.msra.mxu0 0.0
    %242 = vmatprep.subr.mxu0 0.0
    %243 = vmatpush1.msra.mxu0 0.0
    %244 = vmatprep.subr.mxu0 0.0
    %245 = vmatpush1.msra.mxu0 0.0
    %246 = vmatprep.subr.mxu0 0.0
    %247 = vmatpush1.msra.mxu0 0.0
    %248 = vmatprep.subr.mxu0 0.0
    %249 = vmatpush1.msra.mxu0 0.0
    %250 = vmatprep.subr.mxu0 0.0
    %251 = vmatpush1.msra.mxu0 0.0
    %252 = vmatprep.subr.mxu0 0.0
    %253 = vmatpush1.msra.mxu0 0.0
    %254 = vmatprep.subr.mxu0 0.0
    %255 = vmatpush1.msra.mxu0 0.0
    %256 = vmatprep.subr.mxu0 0.0
    %257 = vmatpush1.msra.mxu0 0.0
    %258 = vmatprep.subr.mxu0 0.0
    %259 = vmatpush1.msra.mxu0 0.0
    %260 = vmatprep.subr.mxu0 0.0
    %261 = vmatpush1.msra.mxu0 0.0
    %262 = vmatprep.subr.mxu0 0.0
    %263 = vmatpush1.msra.mxu0 0.0
    %264 = vmatprep.mubr.f32.mxu0 0.0
    %265 = vmatmul.mubr.f32.gmra.mrb[0].mxu0 %v51
    %v266 = vpop.f32.mrb[0].mxu0
    %v267 = vadd.f32 0.0, %v266
    %v268 = vpop.f32.mrb[0].mxu0
    %269 = vmatprep.mubr.f32.mxu0 0.0
    %270 = vmatmul.mubr.f32.gmra.mrb[0].mxu0 %v52
    %v271 = vpop.f32.mrb[0].mxu0
    %v272 = vadd.f32 0.0, %v271
    %v273 = vpop.f32.mrb[0].mxu0
    %274 = vdwg.mxu0
    %vm275 = vcmask 261120
    %v277 = vsel %vm275, %v53, 0
    %v280 = vsel %vm275, %v54, 0
    %282 = vmatprep.subr.mxu0 0.0
    %283 = vmatpush1.msra.mxu0 %v190
    %284 = vmatprep.subr.mxu0 0.0
    %285 = vmatpush1.msra.mxu0 %v196
    %286 = vmatprep.subr.mxu0 0.0
    %287 = vmatpush1.msra.mxu0 %v267
    %288 = vmatprep.subr.mxu0 0.0
    %289 = vmatpush1.msra.mxu0 %v272
    %290 = vmatprep.subr.mxu0 0.0
    %291 = vmatpush1.msra.mxu0 0.0
    %292 = vmatprep.subr.mxu0 0.0
    %293 = vmatpush1.msra.mxu0 0.0
    %294 = vmatprep.subr.mxu0 0.0
    %295 = vmatpush1.msra.mxu0 0.0
    %296 = vmatprep.subr.mxu0 0.0
    %297 = vmatpush1.msra.mxu0 0.0
    %298 = vmatprep.subr.mxu0 0.0
    %299 = vmatpush1.msra.mxu0 0.0
    %300 = vmatprep.subr.mxu0 0.0
    %301 = vmatpush1.msra.mxu0 0.0
    %302 = vmatprep.subr.mxu0 0.0
    %303 = vmatpush1.msra.mxu0 0.0
    %304 = vmatprep.subr.mxu0 0.0
    %305 = vmatpush1.msra.mxu0 0.0
    %306 = vmatprep.subr.mxu0 0.0
    %307 = vmatpush1.msra.mxu0 0.0
    %308 = vmatprep.subr.mxu0 0.0
    %309 = vmatpush1.msra.mxu0 0.0
    %310 = vmatprep.subr.mxu0 0.0
    %311 = vmatpush1.msra.mxu0 0.0
    %312 = vmatprep.subr.mxu0 0.0
    %313 = vmatpush1.msra.mxu0 0.0
    %314 = vmatprep.subr.mxu0 0.0
    %315 = vmatpush1.msra.mxu0 0.0
    %316 = vmatprep.subr.mxu0 0.0
    %317 = vmatpush1.msra.mxu0 0.0
    %318 = vmatprep.subr.mxu0 0.0
    %319 = vmatpush1.msra.mxu0 0.0
    %320 = vmatprep.subr.mxu0 0.0
    %321 = vmatpush1.msra.mxu0 0.0
    %322 = vmatprep.subr.mxu0 0.0
    %323 = vmatpush1.msra.mxu0 0.0
    %324 = vmatprep.subr.mxu0 0.0
    %325 = vmatpush1.msra.mxu0 0.0
    %326 = vmatprep.subr.mxu0 0.0
    %327 = vmatpush1.msra.mxu0 0.0
    %328 = vmatprep.subr.mxu0 0.0
    %329 = vmatpush1.msra.mxu0 0.0
    %330 = vmatprep.subr.mxu0 0.0
    %331 = vmatpush1.msra.mxu0 0.0
    %332 = vmatprep.subr.mxu0 0.0
    %333 = vmatpush1.msra.mxu0 0.0
    %334 = vmatprep.subr.mxu0 0.0
    %335 = vmatpush1.msra.mxu0 0.0
    %336 = vmatprep.subr.mxu0 0.0
    %337 = vmatpush1.msra.mxu0 0.0
    %338 = vmatprep.subr.mxu0 0.0
    %339 = vmatpush1.msra.mxu0 0.0
    %340 = vmatprep.subr.mxu0 0.0
    %341 = vmatpush1.msra.mxu0 0.0
    %342 = vmatprep.subr.mxu0 0.0
    %343 = vmatpush1.msra.mxu0 0.0
    %344 = vmatprep.subr.mxu0 0.0
    %345 = vmatpush1.msra.mxu0 0.0
    %346 = vmatprep.mubr.f32.mxu0 0.0
    %347 = vmatmul.mubr.f32.gmra.mrb[0].mxu0 %v277
    %v348 = vpop.f32.mrb[0].mxu0
    %v349 = vadd.f32 %v192, %v348
    %v350 = vpop.f32.mrb[0].mxu0
    %351 = vmatprep.mubr.f32.mxu0 0.0
    %352 = vmatmul.mubr.f32.gmra.mrb[0].mxu0 %v280
    %v353 = vpop.f32.mrb[0].mxu0
    %v354 = vadd.f32 %v198, %v353
    %v355 = vpop.f32.mrb[0].mxu0
    %356 = vdwg.mxu0
    %v357 = vadd.f32 %v349, %v354
    %v358 = vrot.slane %v357, 4
    %v359 = vadd.f32 %v357, %v358
    %v360 = vrot.slane %v359, 2
    %v361 = vadd.f32 %v359, %v360
    %v362 = vrot.slane %v361, 1
    %v363 = vadd.f32 %v361, %v362
    %364 = vmatprep.subr.mxu0 0.0
    %365 = vmatpush1.msra.mxu0 %v55
    %366 = vmatprep.subr.mxu0 0.0
    %367 = vmatpush1.msra.mxu0 %v56
    %368 = vmatprep.subr.mxu0 0.0
    %369 = vmatpush1.msra.mxu0 %v57
    %370 = vmatprep.subr.mxu0 0.0
    %371 = vmatpush1.msra.mxu0 %v58
    %372 = vmatprep.subr.mxu0 0.0
    %373 = vmatpush1.msra.mxu0 %v59
    %374 = vmatprep.subr.mxu0 0.0
    %375 = vmatpush1.msra.mxu0 %v60
    %376 = vmatprep.subr.mxu0 0.0
    %377 = vmatpush1.msra.mxu0 %v61
    %378 = vmatprep.subr.mxu0 0.0
    %379 = vmatpush1.msra.mxu0 %v62
    %380 = vmatprep.subr.mxu0 0.0
    %381 = vmatpush1.msra.mxu0 %v63
    %382 = vmatprep.subr.mxu0 0.0
    %383 = vmatpush1.msra.mxu0 %v64
    %384 = vmatprep.subr.mxu0 0.0
    %385 = vmatpush1.msra.mxu0 %v65
    %386 = vmatprep.subr.mxu0 0.0
    %387 = vmatpush1.msra.mxu0 %v66
    %388 = vmatprep.subr.mxu0 0.0
    %389 = vmatpush1.msra.mxu0 %v67
    %390 = vmatprep.subr.mxu0 0.0
    %391 = vmatpush1.msra.mxu0 %v68
    %392 = vmatprep.subr.mxu0 0.0
    %393 = vmatpush1.msra.mxu0 %v69
    %394 = vmatprep.subr.mxu0 0.0
    %395 = vmatpush1.msra.mxu0 %v70
    %396 = vmatprep.subr.mxu0 0.0
    %397 = vmatpush1.msra.mxu0 0.0
    %398 = vmatprep.subr.mxu0 0.0
    %399 = vmatpush1.msra.mxu0 0.0
    %400 = vmatprep.subr.mxu0 0.0
    %401 = vmatpush1.msra.mxu0 0.0
    %402 = vmatprep.subr.mxu0 0.0
    %403 = vmatpush1.msra.mxu0 0.0
    %404 = vmatprep.subr.mxu0 0.0
    %405 = vmatpush1.msra.mxu0 0.0
    %406 = vmatprep.subr.mxu0 0.0
    %407 = vmatpush1.msra.mxu0 0.0
    %408 = vmatprep.subr.mxu0 0.0
    %409 = vmatpush1.msra.mxu0 0.0
    %410 = vmatprep.subr.mxu0 0.0
    %411 = vmatpush1.msra.mxu0 0.0
    %412 = vmatprep.subr.mxu0 0.0
    %413 = vmatpush1.msra.mxu0 0.0
    %414 = vmatprep.subr.mxu0 0.0
    %415 = vmatpush1.msra.mxu0 0.0
    %416 = vmatprep.subr.mxu0 0.0
    %417 = vmatpush1.msra.mxu0 0.0
    %418 = vmatprep.subr.mxu0 0.0
    %419 = vmatpush1.msra.mxu0 0.0
    %420 = vmatprep.subr.mxu0 0.0
    %421 = vmatpush1.msra.mxu0 0.0
    %422 = vmatprep.subr.mxu0 0.0
    %423 = vmatpush1.msra.mxu0 0.0
    %424 = vmatprep.subr.mxu0 0.0
    %425 = vmatpush1.msra.mxu0 0.0
    %426 = vmatprep.subr.mxu0 0.0
    %427 = vmatpush1.msra.mxu0 0.0
    %428 = vmatprep.mubr.f32.mxu0 0.0
    %429 = vmatmul.mubr.f32.gmra.mrb[0].mxu0 %v363
    %v430 = vpop.f32.mrb[0].mxu0
    %v431 = vadd.f32 0.0, %v430
    %v432 = vpop.f32.mrb[0].mxu0
    %433 = vdwg.mxu0
    %v434 = vlaneseq
    %v435 = vshrl.u32 %v434, 7
    %v436 = vsub.s32 0, %v435
    %v437 = vrot.slane %v431, %v436
    %v438 = vsub.f32 %v349, %v437
    %v439 = vsub.f32 %v354, %v437
    %v440 = vmul.f32 %v438, %v438
    %v441 = vmul.f32 %v439, %v439
    %v442 = vadd.f32 %v440, %v441
    %v443 = vrot.slane %v442, 4
    %v444 = vadd.f32 %v442, %v443
    %v445 = vrot.slane %v444, 2
    %v446 = vadd.f32 %v444, %v445
    %v447 = vrot.slane %v446, 1
    %v448 = vadd.f32 %v446, %v447
    %449 = vmatprep.subr.mxu0 0.0
    %450 = vmatpush1.msra.mxu0 %v55
    %451 = vmatprep.subr.mxu0 0.0
    %452 = vmatpush1.msra.mxu0 %v56
    %453 = vmatprep.subr.mxu0 0.0
    %454 = vmatpush1.msra.mxu0 %v57
    %455 = vmatprep.subr.mxu0 0.0
    %456 = vmatpush1.msra.mxu0 %v58
    %457 = vmatprep.subr.mxu0 0.0
    %458 = vmatpush1.msra.mxu0 %v59
    %459 = vmatprep.subr.mxu0 0.0
    %460 = vmatpush1.msra.mxu0 %v60
    %461 = vmatprep.subr.mxu0 0.0
    %462 = vmatpush1.msra.mxu0 %v61
    %463 = vmatprep.subr.mxu0 0.0
    %464 = vmatpush1.msra.mxu0 %v62
    %465 = vmatprep.subr.mxu0 0.0
    %466 = vmatpush1.msra.mxu0 %v63
    %467 = vmatprep.subr.mxu0 0.0
    %468 = vmatpush1.msra.mxu0 %v64
    %469 = vmatprep.subr.mxu0 0.0
    %470 = vmatpush1.msra.mxu0 %v65
    %471 = vmatprep.subr.mxu0 0.0
    %472 = vmatpush1.msra.mxu0 %v66
    %473 = vmatprep.subr.mxu0 0.0
    %474 = vmatpush1.msra.mxu0 %v67
    %475 = vmatprep.subr.mxu0 0.0
    %476 = vmatpush1.msra.mxu0 %v68
    %477 = vmatprep.subr.mxu0 0.0
    %478 = vmatpush1.msra.mxu0 %v69
    %479 = vmatprep.subr.mxu0 0.0
    %480 = vmatpush1.msra.mxu0 %v70
    %481 = vmatprep.subr.mxu0 0.0
    %482 = vmatpush1.msra.mxu0 0.0
    %483 = vmatprep.subr.mxu0 0.0
    %484 = vmatpush1.msra.mxu0 0.0
    %485 = vmatprep.subr.mxu0 0.0
    %486 = vmatpush1.msra.mxu0 0.0
    %487 = vmatprep.subr.mxu0 0.0
    %488 = vmatpush1.msra.mxu0 0.0
    %489 = vmatprep.subr.mxu0 0.0
    %490 = vmatpush1.msra.mxu0 0.0
    %491 = vmatprep.subr.mxu0 0.0
    %492 = vmatpush1.msra.mxu0 0.0
    %493 = vmatprep.subr.mxu0 0.0
    %494 = vmatpush1.msra.mxu0 0.0
    %495 = vmatprep.subr.mxu0 0.0
    %496 = vmatpush1.msra.mxu0 0.0
    %497 = vmatprep.subr.mxu0 0.0
    %498 = vmatpush1.msra.mxu0 0.0
    %499 = vmatprep.subr.mxu0 0.0
    %500 = vmatpush1.msra.mxu0 0.0
    %501 = vmatprep.subr.mxu0 0.0
    %502 = vmatpush1.msra.mxu0 0.0
    %503 = vmatprep.subr.mxu0 0.0
    %504 = vmatpush1.msra.mxu0 0.0
    %505 = vmatprep.subr.mxu0 0.0
    %506 = vmatpush1.msra.mxu0 0.0
    %507 = vmatprep.subr.mxu0 0.0
    %508 = vmatpush1.msra.mxu0 0.0
    %509 = vmatprep.subr.mxu0 0.0
    %510 = vmatpush1.msra.mxu0 0.0
    %511 = vmatprep.subr.mxu0 0.0
    %512 = vmatpush1.msra.mxu0 0.0
    %513 = vmatprep.mubr.f32.mxu0 0.0
    %514 = vmatmul.mubr.f32.gmra.mrb[0].mxu0 %v448
    %v515 = vpop.f32.mrb[0].mxu0
    %v516 = vadd.f32 1e-05, %v515
    %v517 = vpop.f32.mrb[0].mxu0
    %518 = vdwg.mxu0
    %v519 = vrsqrt.pop %v516
    %v520 = vmul.f32 %v519, %v71
    %v521 = vlaneseq
    %v522 = vshrl.u32 %v521, 7
    %v523 = vsub.s32 0, %v522
    %v524 = vrot.slane %v520, %v523
    %v525 = vmul.f32 %v438, %v524
    %v526 = vmul.f32 %v439, %v524
    %v527 = vlaneseq
    %v528 = vshrl.u32 %v527, 7
    %v529 = vsub.s32 0, %v528
    %v530 = vrot.slane %v72, %v529
    %v531 = vadd.f32 %v525, %v530
    %v532 = vadd.f32 %v526, %v530
    %v533 = vmax.f32 %v531, 0.0
    %v534 = vmax.f32 %v532, 0.0
    %v535 = vld [vmem:[#allocation2] sm:$0xff]
    %v536 = vld [vmem:[#allocation2 + $0x8] sm:$0xff]
    %v537 = vld [vmem:[#allocation2 + $0x10] sm:$0xff]
    %v538 = vld [vmem:[#allocation2 + $0x18] sm:$0xff]
    %v539 = vld [vmem:[#allocation2 + $0x20] sm:$0xff]
    %v540 = vld [vmem:[#allocation2 + $0x28] sm:$0xff]
    %v541 = vld [vmem:[#allocation2 + $0x30] sm:$0xff]
    %v542 = vld [vmem:[#allocation2 + $0x38] sm:$0xff]
    %v543 = vld [vmem:[#allocation2 + $0x40] sm:$0xff]
    %v544 = vld [vmem:[#allocation2 + $0x48] sm:$0xff]
    %v545 = vld [vmem:[#allocation2 + $0x50] sm:$0xff]
    %v546 = vld [vmem:[#allocation2 + $0x58] sm:$0xff]
    %v547 = vld [vmem:[#allocation2 + $0x60] sm:$0xff]
    %v548 = vld [vmem:[#allocation2 + $0x68] sm:$0xff]
    %v549 = vld [vmem:[#allocation2 + $0x70] sm:$0xff]
    %v550 = vld [vmem:[#allocation2 + $0x78] sm:$0xff]
    %v551 = vld [vmem:[#allocation2 + $0x80] sm:$0xff]
    %v552 = vld [vmem:[#allocation2 + $0x88] sm:$0xff]
    %v553 = vld [vmem:[#allocation2 + $0x90] sm:$0xff]
    %v554 = vld [vmem:[#allocation2 + $0x98] sm:$0xff]
    %v555 = vld [vmem:[#allocation2 + $0xa0] sm:$0xff]
    %v556 = vld [vmem:[#allocation2 + $0xa8] sm:$0xff]
    %v557 = vld [vmem:[#allocation2 + $0xb0] sm:$0xff]
    %v558 = vld [vmem:[#allocation2 + $0xb8] sm:$0xff]
    %v559 = vld [vmem:[#allocation2 + $0xc0] sm:$0xff]
    %v560 = vld [vmem:[#allocation2 + $0xc8] sm:$0xff]
    %v561 = vld [vmem:[#allocation2 + $0xd0] sm:$0xff]
    %v562 = vld [vmem:[#allocation2 + $0xd8] sm:$0xff]
    %v563 = vld [vmem:[#allocation2 + $0xe0] sm:$0xff]
    %v564 = vld [vmem:[#allocation2 + $0xe8] sm:$0xff]
    %v565 = vld [vmem:[#allocation2 + $0xf0] sm:$0xff]
    %v566 = vld [vmem:[#allocation2 + $0xf8] sm:$0xff]
    %v567 = vld [vmem:[#allocation2 + $0x100] sm:$0xff]
    %v568 = vld [vmem:[#allocation2 + $0x108] sm:$0xff]
    %v569 = vld [vmem:[#allocation2 + $0x110] sm:$0xff]
    %v570 = vld [vmem:[#allocation2 + $0x118] sm:$0xff]
    %v571 = vld [vmem:[#allocation2 + $0x120] sm:$0xff]
    %v572 = vld [vmem:[#allocation2 + $0x128] sm:$0xff]
    %v573 = vld [vmem:[#allocation2 + $0x130] sm:$0xff]
    %v574 = vld [vmem:[#allocation2 + $0x138] sm:$0xff]
    %v575 = vld [vmem:[#allocation2 + $0x140] sm:$0xff]
    %v576 = vld [vmem:[#allocation2 + $0x148] sm:$0xff]
    %v577 = vld [vmem:[#allocation2 + $0x150] sm:$0xff]
    %v578 = vld [vmem:[#allocation2 + $0x158] sm:$0xff]
    %v579 = vld [vmem:[#allocation2 + $0x160] sm:$0xff]
    %v580 = vld [vmem:[#allocation2 + $0x168] sm:$0xff]
    %v581 = vld [vmem:[#allocation2 + $0x170] sm:$0xff]
    %v582 = vld [vmem:[#allocation2 + $0x178] sm:$0xff]
    %583 = vmatprep.subr.mxu0 %v536
    %584 = vmatpush1.msra.mxu0 %v535
    %585 = vmatprep.subr.mxu0 %v539
    %586 = vmatpush1.msra.mxu0 %v538
    %587 = vmatprep.subr.mxu0 %v542
    %588 = vmatpush1.msra.mxu0 %v541
    %589 = vmatprep.subr.mxu0 %v545
    %590 = vmatpush1.msra.mxu0 %v544
    %591 = vmatprep.subr.mxu0 %v548
    %592 = vmatpush1.msra.mxu0 %v547
    %593 = vmatprep.subr.mxu0 %v551
    %594 = vmatpush1.msra.mxu0 %v550
    %595 = vmatprep.subr.mxu0 %v554
    %596 = vmatpush1.msra.mxu0 %v553
    %597 = vmatprep.subr.mxu0 %v557
    %598 = vmatpush1.msra.mxu0 %v556
    %599 = vmatprep.subr.mxu0 %v560
    %600 = vmatpush1.msra.mxu0 %v559
    %601 = vmatprep.subr.mxu0 %v563
    %602 = vmatpush1.msra.mxu0 %v562
    %603 = vmatprep.subr.mxu0 %v566
    %604 = vmatpush1.msra.mxu0 %v565
    %605 = vmatprep.subr.mxu0 %v569
    %606 = vmatpush1.msra.mxu0 %v568
    %607 = vmatprep.subr.mxu0 %v572
    %608 = vmatpush1.msra.mxu0 %v571
    %609 = vmatprep.subr.mxu0 %v575
    %610 = vmatpush1.msra.mxu0 %v574
    %611 = vmatprep.subr.mxu0 %v578
    %612 = vmatpush1.msra.mxu0 %v577
    %613 = vmatprep.subr.mxu0 %v581
    %614 = vmatpush1.msra.mxu0 %v580
    %615 = vmatprep.subr.mxu0 0.0
    %616 = vmatpush1.msra.mxu0 0.0
    %617 = vmatprep.subr.mxu0 0.0
    %618 = vmatpush1.msra.mxu0 0.0
    %619 = vmatprep.subr.mxu0 0.0
    %620 = vmatpush1.msra.mxu0 0.0
    %621 = vmatprep.subr.mxu0 0.0
    %622 = vmatpush1.msra.mxu0 0.0
    %623 = vmatprep.subr.mxu0 0.0
    %624 = vmatpush1.msra.mxu0 0.0
    %625 = vmatprep.subr.mxu0 0.0
    %626 = vmatpush1.msra.mxu0 0.0
    %627 = vmatprep.subr.mxu0 0.0
    %628 = vmatpush1.msra.mxu0 0.0
    %629 = vmatprep.subr.mxu0 0.0
    %630 = vmatpush1.msra.mxu0 0.0
    %631 = vmatprep.subr.mxu0 0.0
    %632 = vmatpush1.msra.mxu0 0.0
    %633 = vmatprep.subr.mxu0 0.0
    %634 = vmatpush1.msra.mxu0 0.0
    %635 = vmatprep.subr.mxu0 0.0
    %636 = vmatpush1.msra.mxu0 0.0
    %637 = vmatprep.subr.mxu0 0.0
    %638 = vmatpush1.msra.mxu0 0.0
    %639 = vmatprep.subr.mxu0 0.0
    %640 = vmatpush1.msra.mxu0 0.0
    %641 = vmatprep.subr.mxu0 0.0
    %642 = vmatpush1.msra.mxu0 0.0
    %643 = vmatprep.subr.mxu0 0.0
    %644 = vmatpush1.msra.mxu0 0.0
    %645 = vmatprep.subr.mxu0 0.0
    %646 = vmatpush1.msra.mxu0 0.0
    %647 = vmatprep.mubr.f32.mxu0 0.0
    %648 = vmatmul.mubr.f32.gmra.mrb[0].mxu0 %v533
    %v649 = vpop.f32.mrb[0].mxu0
    %v650 = vadd.f32 0.0, %v649
    %v651 = vpop.f32.mrb[0].mxu0
    %v652 = vadd.f32 0.0, %v651
    %653 = vmatprep.mubr.f32.mxu0 0.0
    %654 = vmatmul.mubr.f32.gmra.mrb[0].mxu0 %v534
    %v655 = vpop.f32.mrb[0].mxu0
    %v656 = vadd.f32 0.0, %v655
    %v657 = vpop.f32.mrb[0].mxu0
    %v658 = vadd.f32 0.0, %v657
    %659 = vdwg.mxu0
    %660 = vmatprep.subr.mxu0 0.0
    %661 = vmatpush1.msra.mxu0 %v537
    %662 = vmatprep.subr.mxu0 0.0
    %663 = vmatpush1.msra.mxu0 %v540
    %664 = vmatprep.subr.mxu0 0.0
    %665 = vmatpush1.msra.mxu0 %v543
    %666 = vmatprep.subr.mxu0 0.0
    %667 = vmatpush1.msra.mxu0 %v546
    %668 = vmatprep.subr.mxu0 0.0
    %669 = vmatpush1.msra.mxu0 %v549
    %670 = vmatprep.subr.mxu0 0.0
    %671 = vmatpush1.msra.mxu0 %v552
    %672 = vmatprep.subr.mxu0 0.0
    %673 = vmatpush1.msra.mxu0 %v555
    %674 = vmatprep.subr.mxu0 0.0
    %675 = vmatpush1.msra.mxu0 %v558
    %676 = vmatprep.subr.mxu0 0.0
    %677 = vmatpush1.msra.mxu0 %v561
    %678 = vmatprep.subr.mxu0 0.0
    %679 = vmatpush1.msra.mxu0 %v564
    %680 = vmatprep.subr.mxu0 0.0
    %681 = vmatpush1.msra.mxu0 %v567
    %682 = vmatprep.subr.mxu0 0.0
    %683 = vmatpush1.msra.mxu0 %v570
    %684 = vmatprep.subr.mxu0 0.0
    %685 = vmatpush1.msra.mxu0 %v573
    %686 = vmatprep.subr.mxu0 0.0
    %687 = vmatpush1.msra.mxu0 %v576
    %688 = vmatprep.subr.mxu0 0.0
    %689 = vmatpush1.msra.mxu0 %v579
    %690 = vmatprep.subr.mxu0 0.0
    %691 = vmatpush1.msra.mxu0 %v582
    %692 = vmatprep.subr.mxu0 0.0
    %693 = vmatpush1.msra.mxu0 0.0
    %694 = vmatprep.subr.mxu0 0.0
    %695 = vmatpush1.msra.mxu0 0.0
    %696 = vmatprep.subr.mxu0 0.0
    %697 = vmatpush1.msra.mxu0 0.0
    %698 = vmatprep.subr.mxu0 0.0
    %699 = vmatpush1.msra.mxu0 0.0
    %700 = vmatprep.subr.mxu0 0.0
    %701 = vmatpush1.msra.mxu0 0.0
    %702 = vmatprep.subr.mxu0 0.0
    %703 = vmatpush1.msra.mxu0 0.0
    %704 = vmatprep.subr.mxu0 0.0
    %705 = vmatpush1.msra.mxu0 0.0
    %706 = vmatprep.subr.mxu0 0.0
    %707 = vmatpush1.msra.mxu0 0.0
    %708 = vmatprep.subr.mxu0 0.0
    %709 = vmatpush1.msra.mxu0 0.0
    %710 = vmatprep.subr.mxu0 0.0
    %711 = vmatpush1.msra.mxu0 0.0
    %712 = vmatprep.subr.mxu0 0.0
    %713 = vmatpush1.msra.mxu0 0.0
    %714 = vmatprep.subr.mxu0 0.0
    %715 = vmatpush1.msra.mxu0 0.0
    %716 = vmatprep.subr.mxu0 0.0
    %717 = vmatpush1.msra.mxu0 0.0
    %718 = vmatprep.subr.mxu0 0.0
    %719 = vmatpush1.msra.mxu0 0.0
    %720 = vmatprep.subr.mxu0 0.0
    %721 = vmatpush1.msra.mxu0 0.0
    %722 = vmatprep.subr.mxu0 0.0
    %723 = vmatpush1.msra.mxu0 0.0
    %724 = vmatprep.mubr.f32.mxu0 0.0
    %725 = vmatmul.mubr.f32.gmra.mrb[0].mxu0 %v533
    %v726 = vpop.f32.mrb[0].mxu0
    %v727 = vadd.f32 0.0, %v726
    %v728 = vpop.f32.mrb[0].mxu0
    %729 = vmatprep.mubr.f32.mxu0 0.0
    %730 = vmatmul.mubr.f32.gmra.mrb[0].mxu0 %v534
    %v731 = vpop.f32.mrb[0].mxu0
    %v732 = vadd.f32 0.0, %v731
    %v733 = vpop.f32.mrb[0].mxu0
    %734 = vdwg.mxu0
    %735 = vmatprep.subr.mxu0 0.0
    %736 = vmatpush1.msra.mxu0 %v650
    %737 = vmatprep.subr.mxu0 0.0
    %738 = vmatpush1.msra.mxu0 %v656
    %739 = vmatprep.subr.mxu0 0.0
    %740 = vmatpush1.msra.mxu0 %v727
    %741 = vmatprep.subr.mxu0 0.0
    %742 = vmatpush1.msra.mxu0 %v732
    %743 = vmatprep.subr.mxu0 0.0
    %744 = vmatpush1.msra.mxu0 0.0
    %745 = vmatprep.subr.mxu0 0.0
    %746 = vmatpush1.msra.mxu0 0.0
    %747 = vmatprep.subr.mxu0 0.0
    %748 = vmatpush1.msra.mxu0 0.0
    %749 = vmatprep.subr.mxu0 0.0
    %750 = vmatpush1.msra.mxu0 0.0
    %751 = vmatprep.subr.mxu0 0.0
    %752 = vmatpush1.msra.mxu0 0.0
    %753 = vmatprep.subr.mxu0 0.0
    %754 = vmatpush1.msra.mxu0 0.0
    %755 = vmatprep.subr.mxu0 0.0
    %756 = vmatpush1.msra.mxu0 0.0
    %757 = vmatprep.subr.mxu0 0.0
    %758 = vmatpush1.msra.mxu0 0.0
    %759 = vmatprep.subr.mxu0 0.0
    %760 = vmatpush1.msra.mxu0 0.0
    %761 = vmatprep.subr.mxu0 0.0
    %762 = vmatpush1.msra.mxu0 0.0
    %763 = vmatprep.subr.mxu0 0.0
    %764 = vmatpush1.msra.mxu0 0.0
    %765 = vmatprep.subr.mxu0 0.0
    %766 = vmatpush1.msra.mxu0 0.0
    %767 = vmatprep.subr.mxu0 0.0
    %768 = vmatpush1.msra.mxu0 0.0
    %769 = vmatprep.subr.mxu0 0.0
    %770 = vmatpush1.msra.mxu0 0.0
    %771 = vmatprep.subr.mxu0 0.0
    %772 = vmatpush1.msra.mxu0 0.0
    %773 = vmatprep.subr.mxu0 0.0
    %774 = vmatpush1.msra.mxu0 0.0
    %775 = vmatprep.subr.mxu0 0.0
    %776 = vmatpush1.msra.mxu0 0.0
    %777 = vmatprep.subr.mxu0 0.0
    %778 = vmatpush1.msra.mxu0 0.0
    %779 = vmatprep.subr.mxu0 0.0
    %780 = vmatpush1.msra.mxu0 0.0
    %781 = vmatprep.subr.mxu0 0.0
    %782 = vmatpush1.msra.mxu0 0.0
    %783 = vmatprep.subr.mxu0 0.0
    %784 = vmatpush1.msra.mxu0 0.0
    %785 = vmatprep.subr.mxu0 0.0
    %786 = vmatpush1.msra.mxu0 0.0
    %787 = vmatprep.subr.mxu0 0.0
    %788 = vmatpush1.msra.mxu0 0.0
    %789 = vmatprep.subr.mxu0 0.0
    %790 = vmatpush1.msra.mxu0 0.0
    %791 = vmatprep.subr.mxu0 0.0
    %792 = vmatpush1.msra.mxu0 0.0
    %793 = vmatprep.subr.mxu0 0.0
    %794 = vmatpush1.msra.mxu0 0.0
    %795 = vmatprep.subr.mxu0 0.0
    %796 = vmatpush1.msra.mxu0 0.0
    %797 = vmatprep.subr.mxu0 0.0
    %798 = vmatpush1.msra.mxu0 0.0
    %799 = vmatprep.mubr.f32.mxu0 0.0
    %800 = vmatmul.mubr.f32.gmra.mrb[0].mxu0 %v277
    %v801 = vpop.f32.mrb[0].mxu0
    %v802 = vadd.f32 %v652, %v801
    %v803 = vpop.f32.mrb[0].mxu0
    %804 = vmatprep.mubr.f32.mxu0 0.0
    %805 = vmatmul.mubr.f32.gmra.mrb[0].mxu0 %v280
    %v806 = vpop.f32.mrb[0].mxu0
    %v807 = vadd.f32 %v658, %v806
    %v808 = vpop.f32.mrb[0].mxu0
    %809 = vdwg.mxu0
    %v810 = vadd.f32 %v802, %v807
    %v811 = vrot.slane %v810, 4
    %v812 = vadd.f32 %v810, %v811
    %v813 = vrot.slane %v812, 2
    %v814 = vadd.f32 %v812, %v813
    %v815 = vrot.slane %v814, 1
    %v816 = vadd.f32 %v814, %v815
    %817 = vmatprep.subr.mxu0 0.0
    %818 = vmatpush1.msra.mxu0 %v55
    %819 = vmatprep.subr.mxu0 0.0
    %820 = vmatpush1.msra.mxu0 %v56
    %821 = vmatprep.subr.mxu0 0.0
    %822 = vmatpush1.msra.mxu0 %v57
    %823 = vmatprep.subr.mxu0 0.0
    %824 = vmatpush1.msra.mxu0 %v58
    %825 = vmatprep.subr.mxu0 0.0
    %826 = vmatpush1.msra.mxu0 %v59
    %827 = vmatprep.subr.mxu0 0.0
    %828 = vmatpush1.msra.mxu0 %v60
    %829 = vmatprep.subr.mxu0 0.0
    %830 = vmatpush1.msra.mxu0 %v61
    %831 = vmatprep.subr.mxu0 0.0
    %832 = vmatpush1.msra.mxu0 %v62
    %833 = vmatprep.subr.mxu0 0.0
    %834 = vmatpush1.msra.mxu0 %v63
    %835 = vmatprep.subr.mxu0 0.0
    %836 = vmatpush1.msra.mxu0 %v64
    %837 = vmatprep.subr.mxu0 0.0
    %838 = vmatpush1.msra.mxu0 %v65
    %839 = vmatprep.subr.mxu0 0.0
    %840 = vmatpush1.msra.mxu0 %v66
    %841 = vmatprep.subr.mxu0 0.0
    %842 = vmatpush1.msra.mxu0 %v67
    %843 = vmatprep.subr.mxu0 0.0
    %844 = vmatpush1.msra.mxu0 %v68
    %845 = vmatprep.subr.mxu0 0.0
    %846 = vmatpush1.msra.mxu0 %v69
    %847 = vmatprep.subr.mxu0 0.0
    %848 = vmatpush1.msra.mxu0 %v70
    %849 = vmatprep.subr.mxu0 0.0
    %850 = vmatpush1.msra.mxu0 0.0
    %851 = vmatprep.subr.mxu0 0.0
    %852 = vmatpush1.msra.mxu0 0.0
    %853 = vmatprep.subr.mxu0 0.0
    %854 = vmatpush1.msra.mxu0 0.0
    %855 = vmatprep.subr.mxu0 0.0
    %856 = vmatpush1.msra.mxu0 0.0
    %857 = vmatprep.subr.mxu0 0.0
    %858 = vmatpush1.msra.mxu0 0.0
    %859 = vmatprep.subr.mxu0 0.0
    %860 = vmatpush1.msra.mxu0 0.0
    %861 = vmatprep.subr.mxu0 0.0
    %862 = vmatpush1.msra.mxu0 0.0
    %863 = vmatprep.subr.mxu0 0.0
    %864 = vmatpush1.msra.mxu0 0.0
    %865 = vmatprep.subr.mxu0 0.0
    %866 = vmatpush1.msra.mxu0 0.0
    %867 = vmatprep.subr.mxu0 0.0
    %868 = vmatpush1.msra.mxu0 0.0
    %869 = vmatprep.subr.mxu0 0.0
    %870 = vmatpush1.msra.mxu0 0.0
    %871 = vmatprep.subr.mxu0 0.0
    %872 = vmatpush1.msra.mxu0 0.0
    %873 = vmatprep.subr.mxu0 0.0
    %874 = vmatpush1.msra.mxu0 0.0
    %875 = vmatprep.subr.mxu0 0.0
    %876 = vmatpush1.msra.mxu0 0.0
    %877 = vmatprep.subr.mxu0 0.0
    %878 = vmatpush1.msra.mxu0 0.0
    %879 = vmatprep.subr.mxu0 0.0
    %880 = vmatpush1.msra.mxu0 0.0
    %881 = vmatprep.mubr.f32.mxu0 0.0
    %882 = vmatmul.mubr.f32.gmra.mrb[0].mxu0 %v816
    %v883 = vpop.f32.mrb[0].mxu0
    %v884 = vadd.f32 0.0, %v883
    %v885 = vpop.f32.mrb[0].mxu0
    %886 = vdwg.mxu0
    %v887 = vlaneseq
    %v888 = vshrl.u32 %v887, 7
    %v889 = vsub.s32 0, %v888
    %v890 = vrot.slane %v884, %v889
    %v891 = vsub.f32 %v802, %v890
    %v892 = vsub.f32 %v807, %v890
    %v893 = vmul.f32 %v891, %v891
    %v894 = vmul.f32 %v892, %v892
    %v895 = vadd.f32 %v893, %v894
    %v896 = vrot.slane %v895, 4
    %v897 = vadd.f32 %v895, %v896
    %v898 = vrot.slane %v897, 2
    %v899 = vadd.f32 %v897, %v898
    %v900 = vrot.slane %v899, 1
    %v901 = vadd.f32 %v899, %v900
    %902 = vmatprep.subr.mxu0 0.0
    %903 = vmatpush1.msra.mxu0 %v55
    %904 = vmatprep.subr.mxu0 0.0
    %905 = vmatpush1.msra.mxu0 %v56
    %906 = vmatprep.subr.mxu0 0.0
    %907 = vmatpush1.msra.mxu0 %v57
    %908 = vmatprep.subr.mxu0 0.0
    %909 = vmatpush1.msra.mxu0 %v58
    %910 = vmatprep.subr.mxu0 0.0
    %911 = vmatpush1.msra.mxu0 %v59
    %912 = vmatprep.subr.mxu0 0.0
    %913 = vmatpush1.msra.mxu0 %v60
    %914 = vmatprep.subr.mxu0 0.0
    %915 = vmatpush1.msra.mxu0 %v61
    %916 = vmatprep.subr.mxu0 0.0
    %917 = vmatpush1.msra.mxu0 %v62
    %918 = vmatprep.subr.mxu0 0.0
    %919 = vmatpush1.msra.mxu0 %v63
    %920 = vmatprep.subr.mxu0 0.0
    %921 = vmatpush1.msra.mxu0 %v64
    %922 = vmatprep.subr.mxu0 0.0
    %923 = vmatpush1.msra.mxu0 %v65
    %924 = vmatprep.subr.mxu0 0.0
    %925 = vmatpush1.msra.mxu0 %v66
    %926 = vmatprep.subr.mxu0 0.0
    %927 = vmatpush1.msra.mxu0 %v67
    %928 = vmatprep.subr.mxu0 0.0
    %929 = vmatpush1.msra.mxu0 %v68
    %930 = vmatprep.subr.mxu0 0.0
    %931 = vmatpush1.msra.mxu0 %v69
    %932 = vmatprep.subr.mxu0 0.0
    %933 = vmatpush1.msra.mxu0 %v70
    %934 = vmatprep.subr.mxu0 0.0
    %935 = vmatpush1.msra.mxu0 0.0
    %936 = vmatprep.subr.mxu0 0.0
    %937 = vmatpush1.msra.mxu0 0.0
    %938 = vmatprep.subr.mxu0 0.0
    %939 = vmatpush1.msra.mxu0 0.0
    %940 = vmatprep.subr.mxu0 0.0
    %941 = vmatpush1.msra.mxu0 0.0
    %942 = vmatprep.subr.mxu0 0.0
    %943 = vmatpush1.msra.mxu0 0.0
    %944 = vmatprep.subr.mxu0 0.0
    %945 = vmatpush1.msra.mxu0 0.0
    %946 = vmatprep.subr.mxu0 0.0
    %947 = vmatpush1.msra.mxu0 0.0
    %948 = vmatprep.subr.mxu0 0.0
    %949 = vmatpush1.msra.mxu0 0.0
    %950 = vmatprep.subr.mxu0 0.0
    %951 = vmatpush1.msra.mxu0 0.0
    %952 = vmatprep.subr.mxu0 0.0
    %953 = vmatpush1.msra.mxu0 0.0
    %954 = vmatprep.subr.mxu0 0.0
    %955 = vmatpush1.msra.mxu0 0.0
    %956 = vmatprep.subr.mxu0 0.0
    %957 = vmatpush1.msra.mxu0 0.0
    %958 = vmatprep.subr.mxu0 0.0
    %959 = vmatpush1.msra.mxu0 0.0
    %960 = vmatprep.subr.mxu0 0.0
    %961 = vmatpush1.msra.mxu0 0.0
    %962 = vmatprep.subr.mxu0 0.0
    %963 = vmatpush1.msra.mxu0 0.0
    %964 = vmatprep.subr.mxu0 0.0
    %965 = vmatpush1.msra.mxu0 0.0
    %966 = vmatprep.mubr.f32.mxu0 0.0
    %967 = vmatmul.mubr.f32.gmra.mrb[0].mxu0 %v901
    %v968 = vpop.f32.mrb[0].mxu0
    %v969 = vadd.f32 1e-05, %v968
    %v970 = vpop.f32.mrb[0].mxu0
    %971 = vdwg.mxu0
    %v972 = vrsqrt.pop %v969
    %v973 = vmul.f32 %v972, %v73
    %v974 = vlaneseq
    %v975 = vshrl.u32 %v974, 7
    %v976 = vsub.s32 0, %v975
    %v977 = vrot.slane %v973, %v976
    %v978 = vmul.f32 %v891, %v977
    %v979 = vmul.f32 %v892, %v977
    %v980 = vlaneseq
    %v981 = vshrl.u32 %v980, 7
    %v982 = vsub.s32 0, %v981
    %v983 = vrot.slane %v74, %v982
    %v984 = vadd.f32 %v978, %v983
    %v985 = vadd.f32 %v979, %v983
    %v986 = vadd.f32 %v51, %v984
    %v987 = vadd.f32 %v52, %v985
    %988 = vst [vmem:[%s6] sm:$0xff] %v986
    %989 = vst [vmem:[%s6 + $0x8] sm:$0xff] %v987
    // Predicated region
    $region34: #{resnet_block_forward.1} parent=1 // pred_check
      _
    $region35: #{resnet_block_forward.1} parent=1 // pred_check_branch
      %991 = sbr.rel (0) target = $region37
    $region36: #{resnet_block_forward.1} parent=1 // pred_region
      _
    $region37: #{resnet_block_forward.1} parent=1 // pred_fallthru
      _
    // Predicated region
    $region38: #{resnet_block_forward.1} parent=1 // pred_check
      _
    $region39: #{resnet_block_forward.1} parent=1 // pred_check_branch
      %993 = sbr.rel (0) target = $region41
    $region40: #{resnet_block_forward.1} parent=1 // pred_region
      _
    $region41: #{resnet_block_forward.1} parent=1 // pred_fallthru
      _
    %994 = vsyncpa [#allocation3], 1
    %995 = vsyncpa [#allocation5], 1

</llo_original>
